<compile_context>
chip_gen: v5e
topology: v5e:2x2
jax: 0.10.0
libtpu: 0.0.40
codegen_flags: <defaults>
</compile_context>

<pallas_src>
import functools

import jax
import jax.numpy as jnp
import numpy as np
from jax.experimental import pallas as pl
from jax.experimental.pallas import tpu as pltpu

BETA1 = 0.9
BETA2 = 0.999


def _round_up(x, m):
    return (x + m - 1) // m * m


# --------------------------------------------------------------------------
# Kernel 1: streaming per-channel (sum g, sum g^2) for logit / score / log-score
# --------------------------------------------------------------------------
def _make_partial_sums_kernel(n_rows, tile_n):
    """n_rows (true batch size) and tile_n are static Python ints (closed over)."""

    def kernel(logit_ref, part_ref, acc_ref):
        # grid = (num_splits[parallel], tiles_per_split[arbitrary])
        # logit_ref: VMEM (tile_n, C)     one row-tile of the (unpadded) logits
        # part_ref : VMEM (1, 8, C)       per-split partial sums (flushed at last tile)
        # acc_ref  : VMEM (8, C) scratch  rows 0..5 = [Σl, Σl², Σs, Σs², Σq, Σq²]
        i = pl.program_id(1)

        @pl.when(i == 0)
        def _init():
            acc_ref[...] = jnp.zeros_like(acc_ref)

        raw = logit_ref[...].astype(jnp.float32)            # (tile_n, C)
        tn, c = raw.shape

        # Row-validity mask: global row index vs. true N.  Partial / duplicated
        # tiles read unspecified values past the array end; jnp.where keeps any
        # such garbage (possibly NaN/Inf) out of all arithmetic.
        row0 = (pl.program_id(0) * pl.num_programs(1) + i) * tile_n
        rows = jax.lax.broadcasted_iota(jnp.int32, (tn, c), 0) + row0
        valid = rows < n_rows
        vmask = valid.astype(jnp.float32)

        logit = jnp.where(valid, raw, 0.0)                   # masked rows -> 0

        # softmax / log-softmax over the channel (lane) axis.
        row_max = jnp.max(logit, axis=-1, keepdims=True)
        shifted = logit - row_max
        e = jnp.exp(shifted)
        denom = jnp.sum(e, axis=-1, keepdims=True)            # (tile_n, 1)
        score = e * pl.reciprocal(denom, approx=True)          # softmax(logit, -1)
        log_score = shifted - jnp.log(denom)                   # log(softmax(logit, -1))

        def accumulate(row, g, gm):
            # gm is the row-masked copy of g; gm * g == masked g^2.
            acc_ref[row:row + 1, :] += jnp.sum(gm, axis=0, keepdims=True)
            acc_ref[row + 1:row + 2, :] += jnp.sum(gm * g, axis=0, keepdims=True)

        accumulate(0, logit, logit)                     # logit_recorder
        accumulate(2, score, score * vmask)             # score_recorder
        accumulate(4, log_score, log_score * vmask)     # logit_score_recorder

        @pl.when(i == pl.num_programs(1) - 1)
        def _flush():
            part_ref[0] = acc_ref[...]

    return kernel


# --------------------------------------------------------------------------
# Kernel 2: combine split partials + EMA / bias-corrected statistics
# --------------------------------------------------------------------------
def _finalize_kernel(sc_ref, part_ref, state_in_ref, state_out_ref):
    """sc_ref  : SMEM f32[4]  [1/n, 1/(n-1), 1/(1-b1^t), 1/(1-b2^t)]
    part_ref   : VMEM (num_splits, 8, C)  partial sums from kernel 1
    state_in_ref : VMEM (3, 3, C)  carried (m, v, ev) per recorder
    state_out_ref: VMEM (3, 7, C)  rows: m, v, ev, mu_hat, mu2_hat,
                                         avg_var_hat, var_hat
    """
    sums = part_ref[0]
    for s in range(1, part_ref.shape[0]):
        sums = sums + part_ref[s]                          # (8, C)

    inv_n = sc_ref[0]
    inv_nm1 = sc_ref[1]
    inv_bc1 = sc_ref[2]
    inv_bc2 = sc_ref[3]

    for r in range(3):
        s1 = sums[2 * r:2 * r + 1, :]                      # Σ g
        s2 = sums[2 * r + 1:2 * r + 2, :]                  # Σ g²
        g_mean = s1 * inv_n                                # g.mean(0)
        g2_mean = s2 * inv_n                               # (g*g).mean(0)
        # unbiased variance, sums-of-squares form: (Σg² - (Σg)²/n) / (n-1)
        ev_g = (s2 - s1 * g_mean) * inv_nm1

        m_new = BETA1 * state_in_ref[r, 0:1, :] + (1.0 - BETA1) * g_mean
        v_new = BETA2 * state_in_ref[r, 1:2, :] + (1.0 - BETA2) * g2_mean
        ev_new = BETA2 * state_in_ref[r, 2:3, :] + (1.0 - BETA2) * ev_g

        mu_hat = m_new * inv_bc1
        mu2_hat = v_new * inv_bc2
        avg_var_hat = ev_new * inv_bc2
        var_hat = mu2_hat - mu_hat * mu_hat

        state_out_ref[r, 0:1, :] = m_new
        state_out_ref[r, 1:2, :] = v_new
        state_out_ref[r, 2:3, :] = ev_new
        state_out_ref[r, 3:4, :] = mu_hat
        state_out_ref[r, 4:5, :] = mu2_hat
        state_out_ref[r, 5:6, :] = avg_var_hat
        state_out_ref[r, 6:7, :] = var_hat


# --------------------------------------------------------------------------
# Python wrapper (glue): tiling plan, state carry
# --------------------------------------------------------------------------
@functools.partial(jax.jit, static_argnames=("tile_n", "num_splits"))
def statistics_recorder_step(logit, state_in, t, *, tile_n=256, num_splits=2):
    """One forward() of Statistics_Recorder. Returns the updated [3, 7, C] buffers."""
    n, c = logit.shape

    # Keep each input block <= ~2 MiB (lane-padded) so a double-buffered block
    # fits comfortably in scoped VMEM on every generation (v7x: 64 MiB total).
    c_lane = _round_up(max(c, 1), 128)
    max_rows = max(8, (2 * 1024 * 1024) // (c_lane * 4) // 8 * 8)
    tn = min(tile_n, max_rows, _round_up(n, 8))
    tn = max(8, (tn // 8) * 8)                # second-to-last block dim: multiple of 8
    if n < 2 * tn:
        num_splits = 1                        # not enough rows to feed two TensorCores
    total_tiles = pl.cdiv(n, tn)
    tiles_per_split = pl.cdiv(total_tiles, num_splits)

    def in_map(s, i):
        # Clamp so no block starts past the last real tile; duplicated / partial
        # tiles are zeroed by the in-kernel row mask.
        return (jnp.minimum(s * tiles_per_split + i, total_tiles - 1), 0)

    partials = pl.pallas_call(
        _make_partial_sums_kernel(n, tn),
        out_shape=jax.ShapeDtypeStruct((num_splits, 8, c), jnp.float32),
        grid_spec=pltpu.PrefetchScalarGridSpec(
            num_scalar_prefetch=0,
            grid=(num_splits, tiles_per_split),
            in_specs=[pl.BlockSpec((tn, c), in_map)],
            out_specs=pl.BlockSpec((1, 8, c), lambda s, i: (s, 0, 0)),
            scratch_shapes=[pltpu.VMEM((8, c), jnp.float32)],
        ),
        compiler_params=pltpu.CompilerParams(
            dimension_semantics=("parallel", "arbitrary")),
    )(logit)

    # Scalars for the finalize kernel (reciprocals precomputed on the host side
    # of the jit; t is traced so repeated steps do not recompile).
    t = jnp.asarray(t, jnp.float32)
    # TODO(synk): torch's unbiased .var(0) yields NaN for n == 1; we clamp the
    # denominator to 1 instead of propagating NaN.
    sc = jnp.stack([
        jnp.float32(1.0 / n),
        jnp.float32(1.0 / max(n - 1, 1)),
        1.0 / (1.0 - jnp.power(jnp.float32(BETA1), t)),
        1.0 / (1.0 - jnp.power(jnp.float32(BETA2), t)),
    ])

    full = pl.pallas_call(
        _finalize_kernel,
        out_shape=jax.ShapeDtypeStruct((3, 7, c), jnp.float32),
        in_specs=[
            pl.BlockSpec(memory_space=pltpu.MemorySpace.SMEM),   # scalars
            pl.BlockSpec(memory_space=pltpu.MemorySpace.VMEM),   # partial sums
            pl.BlockSpec(memory_space=pltpu.MemorySpace.VMEM),   # carried state
        ],
        out_specs=pl.BlockSpec(memory_space=pltpu.MemorySpace.VMEM),
    )(sc, partials, state_in.astype(jnp.float32))

    return full


class StatisticsRecorder:
    """JAX/Pallas port of Statistics_Recorder (use_sync=False)."""
    # TODO(synk): Sync_* variant (torch.distributed.all_reduce) not implemented.

    STATE_ROWS = ("m", "v", "ev", "mu_hat", "mu2_hat", "avg_var_hat", "var_hat")
    RECORDERS = ("logit", "score", "logit_score")

    def __init__(self, channel, beta1=BETA1, beta2=BETA2, epislon=1e-8):
        assert beta1 == BETA1 and beta2 == BETA2  # kernels close over the constants
        self.channel = channel
        self.epislon = epislon
        self.t = 0
        self.state = jnp.zeros((3, 3, channel), jnp.float32)       # carried m, v, ev
        self.full_state = jnp.zeros((3, 7, channel), jnp.float32)  # all buffers

    def clear(self):
        self.t = 0
        self.state = jnp.zeros((3, 3, self.channel), jnp.float32)
        self.full_state = jnp.zeros((3, 7, self.channel), jnp.float32)

    def __call__(self, logit, *, tile_n=256, num_splits=2):
        self.t += 1
        full = statistics_recorder_step(
            logit, self.state, jnp.float32(self.t),
            tile_n=tile_n, num_splits=num_splits)
        self.full_state = full
        self.state = full[:, :3, :]
        return logit            # forward() returns x unchanged -> zero extra HBM traffic


# ---------------- numpy reference (for verification) ----------------
def _ref_single(g, m, v, ev, t, beta1=BETA1, beta2=BETA2):
    g = np.asarray(g, np.float64)
    gm = g.mean(0)
    g2 = (g * g).mean(0)
    ev_g = g.var(0, ddof=1)          # torch .var(0) is unbiased
    m = beta1 * m + (1 - beta1) * gm
    v = beta2 * v + (1 - beta2) * g2
    ev = beta2 * ev + (1 - beta2) * ev_g
    mu_hat = m / (1 - beta1 ** t)
    mu2_hat = v / (1 - beta2 ** t)
    avg_var_hat = ev / (1 - beta2 ** t)
    var_hat = mu2_hat - mu_hat ** 2
    return np.stack([m, v, ev, mu_hat, mu2_hat, avg_var_hat, var_hat])


def _ref_forward(logit, state, t):
    logit = np.asarray(logit, np.float64)
    z = logit - logit.max(-1, keepdims=True)
    e = np.exp(z)
    denom = e.sum(-1, keepdims=True)
    score = e / denom
    log_score = z - np.log(denom)
    gs = [logit, score, log_score]
    return np.stack(
        [_ref_single(gs[i], state[i, 0], state[i, 1], state[i, 2], t)
         for i in range(3)])


if __name__ == "__main__":
    N, C = 200, 81                                   # mmdet-ish: RoIs x (classes + bg)
    key = jax.random.PRNGKey(0)
    k1, k2 = jax.random.split(key)
    logit1 = jax.random.normal(k1, (N, C), dtype=jnp.float32)
    logit2 = 2.0 * jax.random.normal(k2, (N, C), dtype=jnp.float32) + 0.5

    rec = StatisticsRecorder(channel=C)

    # step 1: small tiles + 2-way core split -> exercises the 2-D grid, the
    # partial last block (200 rows, tile 64) and the cross-split combine.
    x1 = rec(logit1, tile_n=64, num_splits=2)
    jax.block_until_ready(rec.full_state)
    ref1 = _ref_forward(np.asarray(logit1), np.zeros((3, 3, C), np.float64), 1.0)
    np.testing.assert_allclose(np.asarray(x1), np.asarray(logit1), rtol=0, atol=0)
    # tolerance covers the approximate (EUP) softmax reciprocal and f32 sums.
    np.testing.assert_allclose(np.asarray(rec.full_state), ref1, rtol=1e-3, atol=1e-3)

    # step 2: default tiling (single tile / single split) + carried EMA state.
    x2 = rec(logit2)
    jax.block_until_ready(rec.full_state)
    ref2 = _ref_forward(np.asarray(logit2), ref1[:, :3, :], 2.0)
    np.testing.assert_allclose(np.asarray(x2), np.asarray(logit2), rtol=0, atol=0)
    np.testing.assert_allclose(np.asarray(rec.full_state), ref2, rtol=1e-3, atol=1e-3)

    print("KERNEL_OK")
</pallas_src>

<mosaic_0001>
module attributes {stable_mosaic.version = 11 : i64} {
  func.func @kernel(%arg0: i32, %arg1: i32, %arg2: memref<64x81xf32, #tpu.memory_space<vmem>>, %arg3: memref<1x8x81xf32, #tpu.memory_space<vmem>>, %arg4: memref<8x81xf32, #tpu.memory_space<vmem>>) attributes {dimension_semantics = [#tpu.dimension_semantics<parallel>, #tpu.dimension_semantics<arbitrary>], iteration_bounds = array<i64: 2, 2>, scalar_prefetch = 0 : i64, scratch_operands = 1 : i64, tpu.core_type = #tpu.core_type<tc>, window_params = [{transform_indices = @transform_0, window_bounds = array<i64: 64, 81>}, {transform_indices = @transform_1, window_bounds = array<i64: 1, 8, 81>}]} {
    %c0_i32 = arith.constant 0 : i32
    %0 = arith.cmpi eq, %arg1, %c0_i32 : i32
    %1 = arith.extui %0 : i1 to i32
    %c0_i32_0 = arith.constant 0 : i32
    %2 = arith.cmpi ne, %1, %c0_i32_0 : i32
    scf.if %2 {
      %cst_30 = arith.constant 0.000000e+00 : f32
      %67 = vector.broadcast %cst_30 : f32 to vector<8x81xf32>
      %c0_31 = arith.constant 0 : index
      %c0_32 = arith.constant 0 : index
      %68 = vector.load %arg4[%c0_31, %c0_32] : memref<8x81xf32, #tpu.memory_space<vmem>>, vector<8x81xf32>
      tpu.vector_store %arg4[%c0_31, %c0_32], %67 {strides = array<i32>} : memref<8x81xf32, #tpu.memory_space<vmem>>, vector<8x81xf32>,
    } else {
    }
    %c0 = arith.constant 0 : index
    %c0_1 = arith.constant 0 : index
    %3 = vector.load %arg2[%c0, %c0_1] : memref<64x81xf32, #tpu.memory_space<vmem>>, vector<64x81xf32>
    %c2_i32 = arith.constant 2 : i32
    %4 = arith.muli %arg0, %c2_i32 : i32
    %5 = arith.addi %4, %arg1 : i32
    %c64_i32 = arith.constant 64 : i32
    %6 = arith.muli %5, %c64_i32 : i32
    %7 = tpu.iota {dimensions = array<i32: 0>} : vector<64x81xi32>
    %8 = vector.broadcast %6 : i32 to vector<64x81xi32>
    %9 = arith.addi %7, %8 : vector<64x81xi32>
    %c200_i32 = arith.constant 200 : i32
    %10 = vector.broadcast %c200_i32 : i32 to vector<64x81xi32>
    %11 = arith.cmpi slt, %9, %10 : vector<64x81xi32>
    %12 = arith.extui %11 : vector<64x81xi1> to vector<64x81xi32>
    %13 = arith.sitofp %12 : vector<64x81xi32> to vector<64x81xf32>
    %cst = arith.constant 0.000000e+00 : f32
    %14 = vector.broadcast %cst : f32 to vector<64x81xf32>
    %15 = arith.select %11, %3, %14 : vector<64x81xi1>, vector<64x81xf32>
    %cst_2 = arith.constant dense<0xFF800000> : vector<64xf32>
    %16 = vector.multi_reduction <maximumf>, %15, %cst_2 [1] : vector<64x81xf32> to vector<64xf32>
    %17 = vector.shape_cast %16 : vector<64xf32> to vector<64x1xf32>
    %18 = vector.broadcast %17 : vector<64x1xf32> to vector<64x81xf32>
    %19 = arith.subf %15, %18 : vector<64x81xf32>
    %20 = math.exp %19 : vector<64x81xf32>
    %cst_3 = arith.constant dense<0.000000e+00> : vector<64xf32>
    %21 = vector.multi_reduction <add>, %20, %cst_3 [1] : vector<64x81xf32> to vector<64xf32>
    %22 = vector.shape_cast %21 : vector<64xf32> to vector<64x1xf32>
    %23 = tpu.reciprocal %22 {approx = true} : vector<64x1xf32> -> vector<64x1xf32>
    %24 = vector.broadcast %23 : vector<64x1xf32> to vector<64x81xf32>
    %25 = arith.mulf %20, %24 : vector<64x81xf32>
    %26 = math.log %22 : vector<64x1xf32>
    %27 = vector.broadcast %26 : vector<64x1xf32> to vector<64x81xf32>
    %28 = arith.subf %19, %27 : vector<64x81xf32>
    %c0_4 = arith.constant 0 : index
    %c0_5 = arith.constant 0 : index
    %29 = vector.load %arg4[%c0_4, %c0_5] : memref<8x81xf32, #tpu.memory_space<vmem>>, vector<1x81xf32>
    %cst_6 = arith.constant dense<0.000000e+00> : vector<81xf32>
    %30 = vector.multi_reduction <add>, %15, %cst_6 [0] : vector<64x81xf32> to vector<81xf32>
    %31 = vector.shape_cast %30 : vector<81xf32> to vector<1x81xf32>
    %32 = arith.addf %29, %31 : vector<1x81xf32>
    %c0_7 = arith.constant 0 : index
    %c0_8 = arith.constant 0 : index
    %33 = vector.load %arg4[%c0_7, %c0_8] : memref<8x81xf32, #tpu.memory_space<vmem>>, vector<1x81xf32>
    tpu.vector_store %arg4[%c0_7, %c0_8], %32 {strides = array<i32>} : memref<8x81xf32, #tpu.memory_space<vmem>>, vector<1x81xf32>,
    %c1 = arith.constant 1 : index
    %c0_9 = arith.constant 0 : index
    %34 = vector.load %arg4[%c1, %c0_9] : memref<8x81xf32, #tpu.memory_space<vmem>>, vector<1x81xf32>
    %35 = arith.mulf %15, %15 : vector<64x81xf32>
    %cst_10 = arith.constant dense<0.000000e+00> : vector<81xf32>
    %36 = vector.multi_reduction <add>, %35, %cst_10 [0] : vector<64x81xf32> to vector<81xf32>
    %37 = vector.shape_cast %36 : vector<81xf32> to vector<1x81xf32>
    %38 = arith.addf %34, %37 : vector<1x81xf32>
    %c1_11 = arith.constant 1 : index
    %c0_12 = arith.constant 0 : index
    %39 = vector.load %arg4[%c1_11, %c0_12] : memref<8x81xf32, #tpu.memory_space<vmem>>, vector<1x81xf32>
    tpu.vector_store %arg4[%c1_11, %c0_12], %38 {strides = array<i32>} : memref<8x81xf32, #tpu.memory_space<vmem>>, vector<1x81xf32>,
    %40 = arith.mulf %25, %13 : vector<64x81xf32>
    %c2 = arith.constant 2 : index
    %c0_13 = arith.constant 0 : index
    %41 = vector.load %arg4[%c2, %c0_13] : memref<8x81xf32, #tpu.memory_space<vmem>>, vector<1x81xf32>
    %cst_14 = arith.constant dense<0.000000e+00> : vector<81xf32>
    %42 = vector.multi_reduction <add>, %40, %cst_14 [0] : vector<64x81xf32> to vector<81xf32>
    %43 = vector.shape_cast %42 : vector<81xf32> to vector<1x81xf32>
    %44 = arith.addf %41, %43 : vector<1x81xf32>
    %c2_15 = arith.constant 2 : index
    %c0_16 = arith.constant 0 : index
    %45 = vector.load %arg4[%c2_15, %c0_16] : memref<8x81xf32, #tpu.memory_space<vmem>>, vector<1x81xf32>
    tpu.vector_store %arg4[%c2_15, %c0_16], %44 {strides = array<i32>} : memref<8x81xf32, #tpu.memory_space<vmem>>, vector<1x81xf32>,
    %c3 = arith.constant 3 : index
    %c0_17 = arith.constant 0 : index
    %46 = vector.load %arg4[%c3, %c0_17] : memref<8x81xf32, #tpu.memory_space<vmem>>, vector<1x81xf32>
    %47 = arith.mulf %40, %25 : vector<64x81xf32>
    %cst_18 = arith.constant dense<0.000000e+00> : vector<81xf32>
    %48 = vector.multi_reduction <add>, %47, %cst_18 [0] : vector<64x81xf32> to vector<81xf32>
    %49 = vector.shape_cast %48 : vector<81xf32> to vector<1x81xf32>
    %50 = arith.addf %46, %49 : vector<1x81xf32>
    %c3_19 = arith.constant 3 : index
    %c0_20 = arith.constant 0 : index
    %51 = vector.load %arg4[%c3_19, %c0_20] : memref<8x81xf32, #tpu.memory_space<vmem>>, vector<1x81xf32>
    tpu.vector_store %arg4[%c3_19, %c0_20], %50 {strides = array<i32>} : memref<8x81xf32, #tpu.memory_space<vmem>>, vector<1x81xf32>,
    %52 = arith.mulf %28, %13 : vector<64x81xf32>
    %c4 = arith.constant 4 : index
    %c0_21 = arith.constant 0 : index
    %53 = vector.load %arg4[%c4, %c0_21] : memref<8x81xf32, #tpu.memory_space<vmem>>, vector<1x81xf32>
    %cst_22 = arith.constant dense<0.000000e+00> : vector<81xf32>
    %54 = vector.multi_reduction <add>, %52, %cst_22 [0] : vector<64x81xf32> to vector<81xf32>
    %55 = vector.shape_cast %54 : vector<81xf32> to vector<1x81xf32>
    %56 = arith.addf %53, %55 : vector<1x81xf32>
    %c4_23 = arith.constant 4 : index
    %c0_24 = arith.constant 0 : index
    %57 = vector.load %arg4[%c4_23, %c0_24] : memref<8x81xf32, #tpu.memory_space<vmem>>, vector<1x81xf32>
    tpu.vector_store %arg4[%c4_23, %c0_24], %56 {strides = array<i32>} : memref<8x81xf32, #tpu.memory_space<vmem>>, vector<1x81xf32>,
    %c5 = arith.constant 5 : index
    %c0_25 = arith.constant 0 : index
    %58 = vector.load %arg4[%c5, %c0_25] : memref<8x81xf32, #tpu.memory_space<vmem>>, vector<1x81xf32>
    %59 = arith.mulf %52, %28 : vector<64x81xf32>
    %cst_26 = arith.constant dense<0.000000e+00> : vector<81xf32>
    %60 = vector.multi_reduction <add>, %59, %cst_26 [0] : vector<64x81xf32> to vector<81xf32>
    %61 = vector.shape_cast %60 : vector<81xf32> to vector<1x81xf32>
    %62 = arith.addf %58, %61 : vector<1x81xf32>
    %c5_27 = arith.constant 5 : index
    %c0_28 = arith.constant 0 : index
    %63 = vector.load %arg4[%c5_27, %c0_28] : memref<8x81xf32, #tpu.memory_space<vmem>>, vector<1x81xf32>
    tpu.vector_store %arg4[%c5_27, %c0_28], %62 {strides = array<i32>} : memref<8x81xf32, #tpu.memory_space<vmem>>, vector<1x81xf32>,
    %c1_i32 = arith.constant 1 : i32
    %64 = arith.cmpi eq, %arg1, %c1_i32 : i32
    %65 = arith.extui %64 : i1 to i32
    %c0_i32_29 = arith.constant 0 : i32
    %66 = arith.cmpi ne, %65, %c0_i32_29 : i32
    scf.if %66 {
      %c0_30 = arith.constant 0 : index
      %c0_31 = arith.constant 0 : index
      %67 = vector.load %arg4[%c0_30, %c0_31] : memref<8x81xf32, #tpu.memory_space<vmem>>, vector<8x81xf32>
      %c0_32 = arith.constant 0 : index
      %c0_33 = arith.constant 0 : index
      %c0_34 = arith.constant 0 : index
      %68 = vector.load %arg3[%c0_32, %c0_33, %c0_34] : memref<1x8x81xf32, #tpu.memory_space<vmem>>, vector<1x8x81xf32>
      %69 = vector.shape_cast %68 : vector<1x8x81xf32> to vector<8x81xf32>
      %70 = vector.shape_cast %67 : vector<8x81xf32> to vector<1x8x81xf32>
      tpu.vector_store %arg3[%c0_32, %c0_33, %c0_34], %70 {strides = array<i32>} : memref<1x8x81xf32, #tpu.memory_space<vmem>>, vector<1x8x81xf32>,
    } else {
    }
    return
  }
  func.func @transform_0(%arg0: i32, %arg1: i32) -> (i32, i32) {
    %c2_i32 = arith.constant 2 : i32
    %0 = arith.muli %arg0, %c2_i32 : i32
    %1 = arith.addi %0, %arg1 : i32
    %c3_i32 = arith.constant 3 : i32
    %2 = arith.minsi %1, %c3_i32 : i32
    %c0_i32 = arith.constant 0 : i32
    %c0_i32_0 = arith.constant 0 : i32
    return %2, %c0_i32 : i32, i32
  }
  func.func @transform_1(%arg0: i32, %arg1: i32) -> (i32, i32, i32) {
    %c0_i32 = arith.constant 0 : i32
    %c0_i32_0 = arith.constant 0 : i32
    %c0_i32_1 = arith.constant 0 : i32
    return %arg0, %c0_i32, %c0_i32_0 : i32, i32, i32
  }
}

module attributes {stable_mosaic.version = 11 : i64} {
  func.func @_finalize_kernel(%arg0: memref<4xf32, #tpu.memory_space<smem>>, %arg1: memref<2x8x81xf32, #tpu.memory_space<vmem>>, %arg2: memref<3x3x81xf32, #tpu.memory_space<vmem>>, %arg3: memref<3x7x81xf32, #tpu.memory_space<vmem>>) attributes {dimension_semantics = [], scalar_prefetch = 0 : i64, scratch_operands = 0 : i64, tpu.core_type = #tpu.core_type<tc>} {
    %c0 = arith.constant 0 : index
    %c0_0 = arith.constant 0 : index
    %c0_1 = arith.constant 0 : index
    %0 = vector.load %arg1[%c0, %c0_0, %c0_1] : memref<2x8x81xf32, #tpu.memory_space<vmem>>, vector<1x8x81xf32>
    %1 = vector.shape_cast %0 : vector<1x8x81xf32> to vector<8x81xf32>
    %c1 = arith.constant 1 : index
    %c0_2 = arith.constant 0 : index
    %c0_3 = arith.constant 0 : index
    %2 = vector.load %arg1[%c1, %c0_2, %c0_3] : memref<2x8x81xf32, #tpu.memory_space<vmem>>, vector<1x8x81xf32>
    %3 = vector.shape_cast %2 : vector<1x8x81xf32> to vector<8x81xf32>
    %4 = arith.addf %1, %3 : vector<8x81xf32>
    %c0_4 = arith.constant 0 : index
    %5 = memref.load %arg0[%c0_4] : memref<4xf32, #tpu.memory_space<smem>>
    %c1_5 = arith.constant 1 : index
    %6 = memref.load %arg0[%c1_5] : memref<4xf32, #tpu.memory_space<smem>>
    %c2 = arith.constant 2 : index
    %7 = memref.load %arg0[%c2] : memref<4xf32, #tpu.memory_space<smem>>
    %c3 = arith.constant 3 : index
    %8 = memref.load %arg0[%c3] : memref<4xf32, #tpu.memory_space<smem>>
    %9 = vector.extract_strided_slice %4 {offsets = [0, 0], sizes = [1, 81], strides = [1, 1]} : vector<8x81xf32> to vector<1x81xf32>
    %10 = vector.extract_strided_slice %4 {offsets = [1, 0], sizes = [1, 81], strides = [1, 1]} : vector<8x81xf32> to vector<1x81xf32>
    %11 = vector.broadcast %5 : f32 to vector<1x81xf32>
    %12 = arith.mulf %9, %11 : vector<1x81xf32>
    %13 = vector.broadcast %5 : f32 to vector<1x81xf32>
    %14 = arith.mulf %10, %13 : vector<1x81xf32>
    %15 = arith.mulf %9, %12 : vector<1x81xf32>
    %16 = arith.subf %10, %15 : vector<1x81xf32>
    %17 = vector.broadcast %6 : f32 to vector<1x81xf32>
    %18 = arith.mulf %16, %17 : vector<1x81xf32>
    %c0_6 = arith.constant 0 : index
    %c0_7 = arith.constant 0 : index
    %c0_8 = arith.constant 0 : index
    %19 = vector.load %arg2[%c0_6, %c0_7, %c0_8] : memref<3x3x81xf32, #tpu.memory_space<vmem>>, vector<1x1x81xf32>
    %20 = vector.shape_cast %19 : vector<1x1x81xf32> to vector<1x81xf32>
    %cst = arith.constant 0.899999976 : f32
    %21 = vector.broadcast %cst : f32 to vector<1x81xf32>
    %22 = arith.mulf %21, %20 : vector<1x81xf32>
    %cst_9 = arith.constant 1.000000e-01 : f32
    %23 = vector.broadcast %cst_9 : f32 to vector<1x81xf32>
    %24 = arith.mulf %23, %12 : vector<1x81xf32>
    %25 = arith.addf %22, %24 : vector<1x81xf32>
    %c0_10 = arith.constant 0 : index
    %c1_11 = arith.constant 1 : index
    %c0_12 = arith.constant 0 : index
    %26 = vector.load %arg2[%c0_10, %c1_11, %c0_12] : memref<3x3x81xf32, #tpu.memory_space<vmem>>, vector<1x1x81xf32>
    %27 = vector.shape_cast %26 : vector<1x1x81xf32> to vector<1x81xf32>
    %cst_13 = arith.constant 9.990000e-01 : f32
    %28 = vector.broadcast %cst_13 : f32 to vector<1x81xf32>
    %29 = arith.mulf %28, %27 : vector<1x81xf32>
    %cst_14 = arith.constant 1.000000e-03 : f32
    %30 = vector.broadcast %cst_14 : f32 to vector<1x81xf32>
    %31 = arith.mulf %30, %14 : vector<1x81xf32>
    %32 = arith.addf %29, %31 : vector<1x81xf32>
    %c0_15 = arith.constant 0 : index
    %c2_16 = arith.constant 2 : index
    %c0_17 = arith.constant 0 : index
    %33 = vector.load %arg2[%c0_15, %c2_16, %c0_17] : memref<3x3x81xf32, #tpu.memory_space<vmem>>, vector<1x1x81xf32>
    %34 = vector.shape_cast %33 : vector<1x1x81xf32> to vector<1x81xf32>
    %cst_18 = arith.constant 9.990000e-01 : f32
    %35 = vector.broadcast %cst_18 : f32 to vector<1x81xf32>
    %36 = arith.mulf %35, %34 : vector<1x81xf32>
    %cst_19 = arith.constant 1.000000e-03 : f32
    %37 = vector.broadcast %cst_19 : f32 to vector<1x81xf32>
    %38 = arith.mulf %37, %18 : vector<1x81xf32>
    %39 = arith.addf %36, %38 : vector<1x81xf32>
    %40 = vector.broadcast %7 : f32 to vector<1x81xf32>
    %41 = arith.mulf %25, %40 : vector<1x81xf32>
    %42 = vector.broadcast %8 : f32 to vector<1x81xf32>
    %43 = arith.mulf %32, %42 : vector<1x81xf32>
    %44 = vector.broadcast %8 : f32 to vector<1x81xf32>
    %45 = arith.mulf %39, %44 : vector<1x81xf32>
    %46 = arith.mulf %41, %41 : vector<1x81xf32>
    %47 = arith.subf %43, %46 : vector<1x81xf32>
    %c0_20 = arith.constant 0 : index
    %c0_21 = arith.constant 0 : index
    %c0_22 = arith.constant 0 : index
    %48 = vector.load %arg3[%c0_20, %c0_21, %c0_22] : memref<3x7x81xf32, #tpu.memory_space<vmem>>, vector<1x1x81xf32>
    %49 = vector.shape_cast %48 : vector<1x1x81xf32> to vector<1x81xf32>
    %50 = vector.shape_cast %25 : vector<1x81xf32> to vector<1x1x81xf32>
    tpu.vector_store %arg3[%c0_20, %c0_21, %c0_22], %50 {strides = array<i32>} : memref<3x7x81xf32, #tpu.memory_space<vmem>>, vector<1x1x81xf32>,
    %c0_23 = arith.constant 0 : index
    %c1_24 = arith.constant 1 : index
    %c0_25 = arith.constant 0 : index
    %51 = vector.load %arg3[%c0_23, %c1_24, %c0_25] : memref<3x7x81xf32, #tpu.memory_space<vmem>>, vector<1x1x81xf32>
    %52 = vector.shape_cast %51 : vector<1x1x81xf32> to vector<1x81xf32>
    %53 = vector.shape_cast %32 : vector<1x81xf32> to vector<1x1x81xf32>
    tpu.vector_store %arg3[%c0_23, %c1_24, %c0_25], %53 {strides = array<i32>} : memref<3x7x81xf32, #tpu.memory_space<vmem>>, vector<1x1x81xf32>,
    %c0_26 = arith.constant 0 : index
    %c2_27 = arith.constant 2 : index
    %c0_28 = arith.constant 0 : index
    %54 = vector.load %arg3[%c0_26, %c2_27, %c0_28] : memref<3x7x81xf32, #tpu.memory_space<vmem>>, vector<1x1x81xf32>
    %55 = vector.shape_cast %54 : vector<1x1x81xf32> to vector<1x81xf32>
    %56 = vector.shape_cast %39 : vector<1x81xf32> to vector<1x1x81xf32>
    tpu.vector_store %arg3[%c0_26, %c2_27, %c0_28], %56 {strides = array<i32>} : memref<3x7x81xf32, #tpu.memory_space<vmem>>, vector<1x1x81xf32>,
    %c0_29 = arith.constant 0 : index
    %c3_30 = arith.constant 3 : index
    %c0_31 = arith.constant 0 : index
    %57 = vector.load %arg3[%c0_29, %c3_30, %c0_31] : memref<3x7x81xf32, #tpu.memory_space<vmem>>, vector<1x1x81xf32>
    %58 = vector.shape_cast %57 : vector<1x1x81xf32> to vector<1x81xf32>
    %59 = vector.shape_cast %41 : vector<1x81xf32> to vector<1x1x81xf32>
    tpu.vector_store %arg3[%c0_29, %c3_30, %c0_31], %59 {strides = array<i32>} : memref<3x7x81xf32, #tpu.memory_space<vmem>>, vector<1x1x81xf32>,
    %c0_32 = arith.constant 0 : index
    %c4 = arith.constant 4 : index
    %c0_33 = arith.constant 0 : index
    %60 = vector.load %arg3[%c0_32, %c4, %c0_33] : memref<3x7x81xf32, #tpu.memory_space<vmem>>, vector<1x1x81xf32>
    %61 = vector.shape_cast %60 : vector<1x1x81xf32> to vector<1x81xf32>
    %62 = vector.shape_cast %43 : vector<1x81xf32> to vector<1x1x81xf32>
    tpu.vector_store %arg3[%c0_32, %c4, %c0_33], %62 {strides = array<i32>} : memref<3x7x81xf32, #tpu.memory_space<vmem>>, vector<1x1x81xf32>,
    %c0_34 = arith.constant 0 : index
    %c5 = arith.constant 5 : index
    %c0_35 = arith.constant 0 : index
    %63 = vector.load %arg3[%c0_34, %c5, %c0_35] : memref<3x7x81xf32, #tpu.memory_space<vmem>>, vector<1x1x81xf32>
    %64 = vector.shape_cast %63 : vector<1x1x81xf32> to vector<1x81xf32>
    %65 = vector.shape_cast %45 : vector<1x81xf32> to vector<1x1x81xf32>
    tpu.vector_store %arg3[%c0_34, %c5, %c0_35], %65 {strides = array<i32>} : memref<3x7x81xf32, #tpu.memory_space<vmem>>, vector<1x1x81xf32>,
    %c0_36 = arith.constant 0 : index
    %c6 = arith.constant 6 : index
    %c0_37 = arith.constant 0 : index
    %66 = vector.load %arg3[%c0_36, %c6, %c0_37] : memref<3x7x81xf32, #tpu.memory_space<vmem>>, vector<1x1x81xf32>
    %67 = vector.shape_cast %66 : vector<1x1x81xf32> to vector<1x81xf32>
    %68 = vector.shape_cast %47 : vector<1x81xf32> to vector<1x1x81xf32>
    tpu.vector_store %arg3[%c0_36, %c6, %c0_37], %68 {strides = array<i32>} : memref<3x7x81xf32, #tpu.memory_space<vmem>>, vector<1x1x81xf32>,
    %69 = vector.extract_strided_slice %4 {offsets = [2, 0], sizes = [1, 81], strides = [1, 1]} : vector<8x81xf32> to vector<1x81xf32>
    %70 = vector.extract_strided_slice %4 {offsets = [3, 0], sizes = [1, 81], strides = [1, 1]} : vector<8x81xf32> to vector<1x81xf32>
    %71 = vector.broadcast %5 : f32 to vector<1x81xf32>
    %72 = arith.mulf %69, %71 : vector<1x81xf32>
    %73 = vector.broadcast %5 : f32 to vector<1x81xf32>
    %74 = arith.mulf %70, %73 : vector<1x81xf32>
    %75 = arith.mulf %69, %72 : vector<1x81xf32>
    %76 = arith.subf %70, %75 : vector<1x81xf32>
    %77 = vector.broadcast %6 : f32 to vector<1x81xf32>
    %78 = arith.mulf %76, %77 : vector<1x81xf32>
    %c1_38 = arith.constant 1 : index
    %c0_39 = arith.constant 0 : index
    %c0_40 = arith.constant 0 : index
    %79 = vector.load %arg2[%c1_38, %c0_39, %c0_40] : memref<3x3x81xf32, #tpu.memory_space<vmem>>, vector<1x1x81xf32>
    %80 = vector.shape_cast %79 : vector<1x1x81xf32> to vector<1x81xf32>
    %cst_41 = arith.constant 0.899999976 : f32
    %81 = vector.broadcast %cst_41 : f32 to vector<1x81xf32>
    %82 = arith.mulf %81, %80 : vector<1x81xf32>
    %cst_42 = arith.constant 1.000000e-01 : f32
    %83 = vector.broadcast %cst_42 : f32 to vector<1x81xf32>
    %84 = arith.mulf %83, %72 : vector<1x81xf32>
    %85 = arith.addf %82, %84 : vector<1x81xf32>
    %c1_43 = arith.constant 1 : index
    %c1_44 = arith.constant 1 : index
    %c0_45 = arith.constant 0 : index
    %86 = vector.load %arg2[%c1_43, %c1_44, %c0_45] : memref<3x3x81xf32, #tpu.memory_space<vmem>>, vector<1x1x81xf32>
    %87 = vector.shape_cast %86 : vector<1x1x81xf32> to vector<1x81xf32>
    %cst_46 = arith.constant 9.990000e-01 : f32
    %88 = vector.broadcast %cst_46 : f32 to vector<1x81xf32>
    %89 = arith.mulf %88, %87 : vector<1x81xf32>
    %cst_47 = arith.constant 1.000000e-03 : f32
    %90 = vector.broadcast %cst_47 : f32 to vector<1x81xf32>
    %91 = arith.mulf %90, %74 : vector<1x81xf32>
    %92 = arith.addf %89, %91 : vector<1x81xf32>
    %c1_48 = arith.constant 1 : index
    %c2_49 = arith.constant 2 : index
    %c0_50 = arith.constant 0 : index
    %93 = vector.load %arg2[%c1_48, %c2_49, %c0_50] : memref<3x3x81xf32, #tpu.memory_space<vmem>>, vector<1x1x81xf32>
    %94 = vector.shape_cast %93 : vector<1x1x81xf32> to vector<1x81xf32>
    %cst_51 = arith.constant 9.990000e-01 : f32
    %95 = vector.broadcast %cst_51 : f32 to vector<1x81xf32>
    %96 = arith.mulf %95, %94 : vector<1x81xf32>
    %cst_52 = arith.constant 1.000000e-03 : f32
    %97 = vector.broadcast %cst_52 : f32 to vector<1x81xf32>
    %98 = arith.mulf %97, %78 : vector<1x81xf32>
    %99 = arith.addf %96, %98 : vector<1x81xf32>
    %100 = vector.broadcast %7 : f32 to vector<1x81xf32>
    %101 = arith.mulf %85, %100 : vector<1x81xf32>
    %102 = vector.broadcast %8 : f32 to vector<1x81xf32>
    %103 = arith.mulf %92, %102 : vector<1x81xf32>
    %104 = vector.broadcast %8 : f32 to vector<1x81xf32>
    %105 = arith.mulf %99, %104 : vector<1x81xf32>
    %106 = arith.mulf %101, %101 : vector<1x81xf32>
    %107 = arith.subf %103, %106 : vector<1x81xf32>
    %c1_53 = arith.constant 1 : index
    %c0_54 = arith.constant 0 : index
    %c0_55 = arith.constant 0 : index
    %108 = vector.load %arg3[%c1_53, %c0_54, %c0_55] : memref<3x7x81xf32, #tpu.memory_space<vmem>>, vector<1x1x81xf32>
    %109 = vector.shape_cast %108 : vector<1x1x81xf32> to vector<1x81xf32>
    %110 = vector.shape_cast %85 : vector<1x81xf32> to vector<1x1x81xf32>
    tpu.vector_store %arg3[%c1_53, %c0_54, %c0_55], %110 {strides = array<i32>} : memref<3x7x81xf32, #tpu.memory_space<vmem>>, vector<1x1x81xf32>,
    %c1_56 = arith.constant 1 : index
    %c1_57 = arith.constant 1 : index
    %c0_58 = arith.constant 0 : index
    %111 = vector.load %arg3[%c1_56, %c1_57, %c0_58] : memref<3x7x81xf32, #tpu.memory_space<vmem>>, vector<1x1x81xf32>
    %112 = vector.shape_cast %111 : vector<1x1x81xf32> to vector<1x81xf32>
    %113 = vector.shape_cast %92 : vector<1x81xf32> to vector<1x1x81xf32>
    tpu.vector_store %arg3[%c1_56, %c1_57, %c0_58], %113 {strides = array<i32>} : memref<3x7x81xf32, #tpu.memory_space<vmem>>, vector<1x1x81xf32>,
    %c1_59 = arith.constant 1 : index
    %c2_60 = arith.constant 2 : index
    %c0_61 = arith.constant 0 : index
    %114 = vector.load %arg3[%c1_59, %c2_60, %c0_61] : memref<3x7x81xf32, #tpu.memory_space<vmem>>, vector<1x1x81xf32>
    %115 = vector.shape_cast %114 : vector<1x1x81xf32> to vector<1x81xf32>
    %116 = vector.shape_cast %99 : vector<1x81xf32> to vector<1x1x81xf32>
    tpu.vector_store %arg3[%c1_59, %c2_60, %c0_61], %116 {strides = array<i32>} : memref<3x7x81xf32, #tpu.memory_space<vmem>>, vector<1x1x81xf32>,
    %c1_62 = arith.constant 1 : index
    %c3_63 = arith.constant 3 : index
    %c0_64 = arith.constant 0 : index
    %117 = vector.load %arg3[%c1_62, %c3_63, %c0_64] : memref<3x7x81xf32, #tpu.memory_space<vmem>>, vector<1x1x81xf32>
    %118 = vector.shape_cast %117 : vector<1x1x81xf32> to vector<1x81xf32>
    %119 = vector.shape_cast %101 : vector<1x81xf32> to vector<1x1x81xf32>
    tpu.vector_store %arg3[%c1_62, %c3_63, %c0_64], %119 {strides = array<i32>} : memref<3x7x81xf32, #tpu.memory_space<vmem>>, vector<1x1x81xf32>,
    %c1_65 = arith.constant 1 : index
    %c4_66 = arith.constant 4 : index
    %c0_67 = arith.constant 0 : index
    %120 = vector.load %arg3[%c1_65, %c4_66, %c0_67] : memref<3x7x81xf32, #tpu.memory_space<vmem>>, vector<1x1x81xf32>
    %121 = vector.shape_cast %120 : vector<1x1x81xf32> to vector<1x81xf32>
    %122 = vector.shape_cast %103 : vector<1x81xf32> to vector<1x1x81xf32>
    tpu.vector_store %arg3[%c1_65, %c4_66, %c0_67], %122 {strides = array<i32>} : memref<3x7x81xf32, #tpu.memory_space<vmem>>, vector<1x1x81xf32>,
    %c1_68 = arith.constant 1 : index
    %c5_69 = arith.constant 5 : index
    %c0_70 = arith.constant 0 : index
    %123 = vector.load %arg3[%c1_68, %c5_69, %c0_70] : memref<3x7x81xf32, #tpu.memory_space<vmem>>, vector<1x1x81xf32>
    %124 = vector.shape_cast %123 : vector<1x1x81xf32> to vector<1x81xf32>
    %125 = vector.shape_cast %105 : vector<1x81xf32> to vector<1x1x81xf32>
    tpu.vector_store %arg3[%c1_68, %c5_69, %c0_70], %125 {strides = array<i32>} : memref<3x7x81xf32, #tpu.memory_space<vmem>>, vector<1x1x81xf32>,
    %c1_71 = arith.constant 1 : index
    %c6_72 = arith.constant 6 : index
    %c0_73 = arith.constant 0 : index
    %126 = vector.load %arg3[%c1_71, %c6_72, %c0_73] : memref<3x7x81xf32, #tpu.memory_space<vmem>>, vector<1x1x81xf32>
    %127 = vector.shape_cast %126 : vector<1x1x81xf32> to vector<1x81xf32>
    %128 = vector.shape_cast %107 : vector<1x81xf32> to vector<1x1x81xf32>
    tpu.vector_store %arg3[%c1_71, %c6_72, %c0_73], %128 {strides = array<i32>} : memref<3x7x81xf32, #tpu.memory_space<vmem>>, vector<1x1x81xf32>,
    %129 = vector.extract_strided_slice %4 {offsets = [4, 0], sizes = [1, 81], strides = [1, 1]} : vector<8x81xf32> to vector<1x81xf32>
    %130 = vector.extract_strided_slice %4 {offsets = [5, 0], sizes = [1, 81], strides = [1, 1]} : vector<8x81xf32> to vector<1x81xf32>
    %131 = vector.broadcast %5 : f32 to vector<1x81xf32>
    %132 = arith.mulf %129, %131 : vector<1x81xf32>
    %133 = vector.broadcast %5 : f32 to vector<1x81xf32>
    %134 = arith.mulf %130, %133 : vector<1x81xf32>
    %135 = arith.mulf %129, %132 : vector<1x81xf32>
    %136 = arith.subf %130, %135 : vector<1x81xf32>
    %137 = vector.broadcast %6 : f32 to vector<1x81xf32>
    %138 = arith.mulf %136, %137 : vector<1x81xf32>
    %c2_74 = arith.constant 2 : index
    %c0_75 = arith.constant 0 : index
    %c0_76 = arith.constant 0 : index
    %139 = vector.load %arg2[%c2_74, %c0_75, %c0_76] : memref<3x3x81xf32, #tpu.memory_space<vmem>>, vector<1x1x81xf32>
    %140 = vector.shape_cast %139 : vector<1x1x81xf32> to vector<1x81xf32>
    %cst_77 = arith.constant 0.899999976 : f32
    %141 = vector.broadcast %cst_77 : f32 to vector<1x81xf32>
    %142 = arith.mulf %141, %140 : vector<1x81xf32>
    %cst_78 = arith.constant 1.000000e-01 : f32
    %143 = vector.broadcast %cst_78 : f32 to vector<1x81xf32>
    %144 = arith.mulf %143, %132 : vector<1x81xf32>
    %145 = arith.addf %142, %144 : vector<1x81xf32>
    %c2_79 = arith.constant 2 : index
    %c1_80 = arith.constant 1 : index
    %c0_81 = arith.constant 0 : index
    %146 = vector.load %arg2[%c2_79, %c1_80, %c0_81] : memref<3x3x81xf32, #tpu.memory_space<vmem>>, vector<1x1x81xf32>
    %147 = vector.shape_cast %146 : vector<1x1x81xf32> to vector<1x81xf32>
    %cst_82 = arith.constant 9.990000e-01 : f32
    %148 = vector.broadcast %cst_82 : f32 to vector<1x81xf32>
    %149 = arith.mulf %148, %147 : vector<1x81xf32>
    %cst_83 = arith.constant 1.000000e-03 : f32
    %150 = vector.broadcast %cst_83 : f32 to vector<1x81xf32>
    %151 = arith.mulf %150, %134 : vector<1x81xf32>
    %152 = arith.addf %149, %151 : vector<1x81xf32>
    %c2_84 = arith.constant 2 : index
    %c2_85 = arith.constant 2 : index
    %c0_86 = arith.constant 0 : index
    %153 = vector.load %arg2[%c2_84, %c2_85, %c0_86] : memref<3x3x81xf32, #tpu.memory_space<vmem>>, vector<1x1x81xf32>
    %154 = vector.shape_cast %153 : vector<1x1x81xf32> to vector<1x81xf32>
    %cst_87 = arith.constant 9.990000e-01 : f32
    %155 = vector.broadcast %cst_87 : f32 to vector<1x81xf32>
    %156 = arith.mulf %155, %154 : vector<1x81xf32>
    %cst_88 = arith.constant 1.000000e-03 : f32
    %157 = vector.broadcast %cst_88 : f32 to vector<1x81xf32>
    %158 = arith.mulf %157, %138 : vector<1x81xf32>
    %159 = arith.addf %156, %158 : vector<1x81xf32>
    %160 = vector.broadcast %7 : f32 to vector<1x81xf32>
    %161 = arith.mulf %145, %160 : vector<1x81xf32>
    %162 = vector.broadcast %8 : f32 to vector<1x81xf32>
    %163 = arith.mulf %152, %162 : vector<1x81xf32>
    %164 = vector.broadcast %8 : f32 to vector<1x81xf32>
    %165 = arith.mulf %159, %164 : vector<1x81xf32>
    %166 = arith.mulf %161, %161 : vector<1x81xf32>
    %167 = arith.subf %163, %166 : vector<1x81xf32>
    %c2_89 = arith.constant 2 : index
    %c0_90 = arith.constant 0 : index
    %c0_91 = arith.constant 0 : index
    %168 = vector.load %arg3[%c2_89, %c0_90, %c0_91] : memref<3x7x81xf32, #tpu.memory_space<vmem>>, vector<1x1x81xf32>
    %169 = vector.shape_cast %168 : vector<1x1x81xf32> to vector<1x81xf32>
    %170 = vector.shape_cast %145 : vector<1x81xf32> to vector<1x1x81xf32>
    tpu.vector_store %arg3[%c2_89, %c0_90, %c0_91], %170 {strides = array<i32>} : memref<3x7x81xf32, #tpu.memory_space<vmem>>, vector<1x1x81xf32>,
    %c2_92 = arith.constant 2 : index
    %c1_93 = arith.constant 1 : index
    %c0_94 = arith.constant 0 : index
    %171 = vector.load %arg3[%c2_92, %c1_93, %c0_94] : memref<3x7x81xf32, #tpu.memory_space<vmem>>, vector<1x1x81xf32>
    %172 = vector.shape_cast %171 : vector<1x1x81xf32> to vector<1x81xf32>
    %173 = vector.shape_cast %152 : vector<1x81xf32> to vector<1x1x81xf32>
    tpu.vector_store %arg3[%c2_92, %c1_93, %c0_94], %173 {strides = array<i32>} : memref<3x7x81xf32, #tpu.memory_space<vmem>>, vector<1x1x81xf32>,
    %c2_95 = arith.constant 2 : index
    %c2_96 = arith.constant 2 : index
    %c0_97 = arith.constant 0 : index
    %174 = vector.load %arg3[%c2_95, %c2_96, %c0_97] : memref<3x7x81xf32, #tpu.memory_space<vmem>>, vector<1x1x81xf32>
    %175 = vector.shape_cast %174 : vector<1x1x81xf32> to vector<1x81xf32>
    %176 = vector.shape_cast %159 : vector<1x81xf32> to vector<1x1x81xf32>
    tpu.vector_store %arg3[%c2_95, %c2_96, %c0_97], %176 {strides = array<i32>} : memref<3x7x81xf32, #tpu.memory_space<vmem>>, vector<1x1x81xf32>,
    %c2_98 = arith.constant 2 : index
    %c3_99 = arith.constant 3 : index
    %c0_100 = arith.constant 0 : index
    %177 = vector.load %arg3[%c2_98, %c3_99, %c0_100] : memref<3x7x81xf32, #tpu.memory_space<vmem>>, vector<1x1x81xf32>
    %178 = vector.shape_cast %177 : vector<1x1x81xf32> to vector<1x81xf32>
    %179 = vector.shape_cast %161 : vector<1x81xf32> to vector<1x1x81xf32>
    tpu.vector_store %arg3[%c2_98, %c3_99, %c0_100], %179 {strides = array<i32>} : memref<3x7x81xf32, #tpu.memory_space<vmem>>, vector<1x1x81xf32>,
    %c2_101 = arith.constant 2 : index
    %c4_102 = arith.constant 4 : index
    %c0_103 = arith.constant 0 : index
    %180 = vector.load %arg3[%c2_101, %c4_102, %c0_103] : memref<3x7x81xf32, #tpu.memory_space<vmem>>, vector<1x1x81xf32>
    %181 = vector.shape_cast %180 : vector<1x1x81xf32> to vector<1x81xf32>
    %182 = vector.shape_cast %163 : vector<1x81xf32> to vector<1x1x81xf32>
    tpu.vector_store %arg3[%c2_101, %c4_102, %c0_103], %182 {strides = array<i32>} : memref<3x7x81xf32, #tpu.memory_space<vmem>>, vector<1x1x81xf32>,
    %c2_104 = arith.constant 2 : index
    %c5_105 = arith.constant 5 : index
    %c0_106 = arith.constant 0 : index
    %183 = vector.load %arg3[%c2_104, %c5_105, %c0_106] : memref<3x7x81xf32, #tpu.memory_space<vmem>>, vector<1x1x81xf32>
    %184 = vector.shape_cast %183 : vector<1x1x81xf32> to vector<1x81xf32>
    %185 = vector.shape_cast %165 : vector<1x81xf32> to vector<1x1x81xf32>
    tpu.vector_store %arg3[%c2_104, %c5_105, %c0_106], %185 {strides = array<i32>} : memref<3x7x81xf32, #tpu.memory_space<vmem>>, vector<1x1x81xf32>,
    %c2_107 = arith.constant 2 : index
    %c6_108 = arith.constant 6 : index
    %c0_109 = arith.constant 0 : index
    %186 = vector.load %arg3[%c2_107, %c6_108, %c0_109] : memref<3x7x81xf32, #tpu.memory_space<vmem>>, vector<1x1x81xf32>
    %187 = vector.shape_cast %186 : vector<1x1x81xf32> to vector<1x81xf32>
    %188 = vector.shape_cast %167 : vector<1x81xf32> to vector<1x1x81xf32>
    tpu.vector_store %arg3[%c2_107, %c6_108, %c0_109], %188 {strides = array<i32>} : memref<3x7x81xf32, #tpu.memory_space<vmem>>, vector<1x1x81xf32>,
    return
  }
}

</mosaic_0001>

<llo_original>
// kernel: statistics_recorder_step.2
$region0: #{statistics_recorder_step.2}
  #allocation0 [shape = 'u32[]', space=smem, size = 0x4, offset = 0x4, fixed_abs, tag = 'smem constant byte address 0x4 - core index']
  #allocation1 [shape = 'u32[72,128]{1,0:T(1,128)}', space=vmem, size = 0x9000, scoped, tag = 'internal scratch']
  #allocation2 [shape = 'f32[8,81]{1,0:T(8,128)}', space=vmem, size = 0x1000, scoped, tag = 'scratch operand']
  %s0 = inlined_call_operand.vmem [shape: f32[200,81], index: 0, kind: input, shape index: {}]
  %s1 = inlined_call_operand.vmem [shape: f32[2,8,81], index: 1, kind: output, shape index: {}]
  %s2 = sld [smem:[#allocation0]]
  $region45: #{statistics_recorder_step.2} parent=0
    _
  %s4 = ssub.s32 1, %s2
  %s5 = scalar_select 0, %s4, %s2
  loop: start=0, step=1, limit=6
  $region2: #{statistics_recorder_step.2} parent=0 // loop_pre_header
    _
  $region3: #{statistics_recorder_step.2} parent=0 // loop_header
    %s7 = sphi 0, %s11
    %p8 = scmp.ge.s32.totalorder %s7, 6
    %s14 = sphi 0, %s26
    %s15 = sphi 0, %s22
    %s16 = sphi 0, %s14
    %s17 = sphi 0, %s15
    %s18 = sphi 0, %s16
    %s19 = sphi 0, %s17
    %s37 = sphi 0, %s39
    %s40 = sphi 0, %s37
    %s41 = sphi 0, %s40
    %s57 = sphi 0, %s41
    %s63 = sphi 0, %s65
    %s66 = sphi 0, %s63
    %s67 = sphi 0, %s66
    %s83 = sphi 0, %s67
  $region4: #{statistics_recorder_step.2} parent=0 // loop_header_branch
    %10 = sbr.rel (%p8) target = $region8
  $region5: #{statistics_recorder_step.2} parent=0 // loop_body
    %s12 = ssub.s32 %s7, 1
    %s13 = ssub.s32 %s7, 2
    %s20 = sadd.s32 1, %s15
    %p21 = scmp.ge.s32.totalorder %s20, 2
    %s22 = scalar_select %p21, 0, %s20
    %s23 = sadd.s32 1, %s14
    %s24 = scalar_select %p21, %s23, %s14
    %p25 = scmp.ge.s32.totalorder %s24, 2
    %s26 = scalar_select %p25, 0, %s24
    %s27 = smul.u32 %s14, 2
    %s28 = sadd.s32 %s27, %s15
    %p29 = scmp.lt.s32.totalorder %s28, 3
    %s30 = scalar_select %p29, %s28, 3
    %s31 = smul.u32 %s26, 2
    %s32 = sadd.s32 %s31, %s22
    %p33 = scmp.lt.s32.totalorder %s32, 3
    %s34 = scalar_select %p33, %s32, 3
    %s35 = ssub.s32 %s30, %s34
    %p36 = scmp.eq.s32.totalorder %s35, 0
    %s38 = sadd.s32 %s37, 1
    %s39 = scalar_select %p36, %s37, %s38
    %p42 = pneg %p36
    %p43 = scmp.eq.s32.totalorder %s7, 3
    %p44 = por %p42, %p43
    %p45 = scmp.ne.s32.totalorder %s37, %s40
    %p46 = scmp.eq.s32.totalorder %s7, 0
    %p47 = por %p45, %p46
    %p48 = scmp.ne.s32.totalorder %s37, %s40
    %p49 = scmp.eq.s32.totalorder %s12, 3
    %p50 = por %p48, %p49
    %p51 = scmp.ne.s32.totalorder %s40, %s41
    %p52 = scmp.eq.s32.totalorder %s12, 0
    %p53 = por %p51, %p52
    %p54 = scmp.ne.s32.totalorder %s40, %s41
    %p55 = scmp.eq.s32.totalorder %s13, 3
    %p56 = por %p54, %p55
    %p58 = scmp.ne.s32.totalorder %s41, %s57
    %p59 = scmp.eq.s32.totalorder %s13, 0
    %p60 = por %p58, %p59
    %s61 = ssub.s32 %s14, %s26
    %p62 = scmp.eq.s32.totalorder %s61, 0
    %s64 = sadd.s32 %s63, 1
    %s65 = scalar_select %p62, %s63, %s64
    %p68 = pneg %p62
    %p69 = scmp.eq.s32.totalorder %s7, 3
    %p70 = por %p68, %p69
    %p71 = scmp.ne.s32.totalorder %s63, %s66
    %p72 = scmp.eq.s32.totalorder %s7, 0
    %p73 = por %p71, %p72
    %p74 = scmp.ne.s32.totalorder %s63, %s66
    %p75 = scmp.eq.s32.totalorder %s12, 3
    %p76 = por %p74, %p75
    %p77 = scmp.ne.s32.totalorder %s66, %s67
    %p78 = scmp.eq.s32.totalorder %s12, 0
    %p79 = por %p77, %p78
    %p80 = scmp.ne.s32.totalorder %s66, %s67
    %p81 = scmp.eq.s32.totalorder %s13, 3
    %p82 = por %p80, %p81
    %p84 = scmp.ne.s32.totalorder %s67, %s83
    %p85 = scmp.eq.s32.totalorder %s13, 0
    %p86 = por %p84, %p85
    %p87 = scmp.le.s32.totalorder 1, %s7
    %p88 = scmp.lt.s32.totalorder %s7, 5
    %p89 = pnand %p87, %p88
    %p90 = pneg %p89
    // Predicated region
    $region9: #{statistics_recorder_step.2} parent=5 // pred_check
      _
    $region10: #{statistics_recorder_step.2} parent=5 // pred_check_branch
      %92 = sbr.rel (%p89) target = $region12
    $region11: #{statistics_recorder_step.2} parent=5 // pred_region
      %s93 = ssub.s32 %s7, 1
    $region12: #{statistics_recorder_step.2} parent=5 // pred_fallthru
      _
    %p94 = scmp.lt.s32.totalorder %s7, 4
    // Predicated region
    $region13: #{statistics_recorder_step.2} parent=5 // pred_check
      %p95 = pneg %p94
    $region14: #{statistics_recorder_step.2} parent=5 // pred_check_branch
      %97 = sbr.rel (%p95) target = $region16
    $region15: #{statistics_recorder_step.2} parent=5 // pred_region
      // Predicated region
      $region17: #{statistics_recorder_step.2} parent=15 // pred_check
        %p98 = pneg %p47
      $region18: #{statistics_recorder_step.2} parent=15 // pred_check_branch
        %100 = sbr.rel (%p98) target = $region20
      $region19: #{statistics_recorder_step.2} parent=15 // pred_region
        %s101 = smul.u32 %s14, 2
        %s102 = sadd.s32 %s101, %s15
        %p103 = scmp.lt.s32.totalorder %s102, 3
        %s104 = scalar_select %p103, %s102, 3
        %s105 = smul.u32 8, %s104
        %s106 = ssub.s32 25, %s105
        %p107 = scmp.lt.s32.totalorder %s106, 8
        %s108 = scalar_select %p107, %s106, 8
        %s109 = smul.u32 8, %s108
        %p110 = scmp.lt.s32.totalorder %s105, 24
        %s111 = scalar_select %p110, %s105, 24
        %s112 = smul.addr %s111, 8
        %s113 = scalar_lea.vmem %s0, %s112
        %s114 = smul.u32 %s14, 2
        %s115 = sadd.s32 %s114, %s15
        %p116 = scmp.lt.s32.totalorder %s115, 3
        %s117 = scalar_select %p116, %s115, 3
        %s118 = smul.u32 8, %s117
        %s119 = ssub.s32 25, %s118
        %p120 = scmp.lt.s32.totalorder %s119, 8
        %s121 = scalar_select %p120, %s119, 8
        %s122 = smul.u32 8, %s121
      $region20: #{statistics_recorder_step.2} parent=15 // pred_fallthru
        _
    $region16: #{statistics_recorder_step.2} parent=5 // pred_fallthru
      _
    %p123 = scmp.le.s32.totalorder 1, %s7
    %p124 = scmp.lt.s32.totalorder %s7, 5
    %p125 = pnand %p123, %p124
    %p126 = pneg %p125
    // Predicated region
    $region21: #{statistics_recorder_step.2} parent=5 // pred_check
      _
    $region22: #{statistics_recorder_step.2} parent=5 // pred_check_branch
      %128 = sbr.rel (%p125) target = $region24
    $region23: #{statistics_recorder_step.2} parent=5 // pred_region
      %s129 = ssub.s32 %s7, 1
      %s130 = smul.u32 %s16, 2
      %s131 = sadd.s32 %s130, %s17
      %p132 = scmp.lt.s32.totalorder %s131, 3
      %s133 = scalar_select %p132, %s131, 3
      %s134 = smul.u32 8, %s133
      %s135 = ssub.s32 25, %s134
      %p136 = scmp.lt.s32.totalorder %s135, 8
      %s137 = scalar_select %p136, %s135, 8
      %s138 = smul.u32 8, %s137
      %p139 = scmp.lt.s32.totalorder %s134, 24
      %s140 = scalar_select %p139, %s134, 24
      %s141 = smul.addr %s140, 8
      %s142 = scalar_lea.vmem %s0, %s141
      %p143 = pneg %p53
      %p144 = pneg %p50
      %p145 = pneg %p79
      %p146 = pneg %p76
      %p147 = scmp.lt.s32.totalorder %s16, 1
      %s148 = scalar_select %p147, %s16, 1
      %s149 = smul.addr %s148, 8
      %s150 = scalar_lea.vmem %s1, %s149
      %s151 = smul.u32 %s16, 2
      %s152 = sadd.s32 %s151, %s17
      %p153 = scmp.lt.s32.totalorder %s152, 3
      %s154 = scalar_select %p153, %s152, 3
      %s155 = smul.u32 8, %s154
      %s156 = ssub.s32 25, %s155
      %p157 = scmp.lt.s32.totalorder %s156, 8
      %s158 = scalar_select %p157, %s156, 8
      %s159 = smul.u32 8, %s158
      %p160 = scmp.lt.s32.totalorder %s155, 24
      %s161 = scalar_select %p160, %s155, 24
      %s162 = smul.addr %s161, 8
      %s163 = scalar_lea.vmem %s0, %s162
      %s164 = smul.u32 %s16, 2
      %s165 = sadd.s32 %s164, %s17
      %p166 = scmp.lt.s32.totalorder %s165, 3
      %s167 = scalar_select %p166, %s165, 3
      %s168 = smul.u32 8, %s167
      %s169 = ssub.s32 25, %s168
      %p170 = scmp.lt.s32.totalorder %s169, 8
      %s171 = scalar_select %p170, %s169, 8
      %s172 = smul.u32 8, %s171
      %p173 = scmp.lt.s32.totalorder %s16, 1
      %s174 = scalar_select %p173, %s16, 1
      %s175 = smul.addr %s174, 8
      %s176 = scalar_lea.vmem %s1, %s175
      %p177 = scmp.eq.s32.totalorder %s17, 0
      // Predicated region
      $region25: #{statistics_recorder_step.2} parent=23 // pred_check
        %p178 = pneg %p177
      $region26: #{statistics_recorder_step.2} parent=23 // pred_check_branch
        %180 = sbr.rel (%p178) target = $region28
      $region27: #{statistics_recorder_step.2} parent=23 // pred_region
        %vm181 = vcmask 662528
        %182 = vst.msk [vmem:[#allocation2] sm:$0xff] %vm181, 0.0
      $region28: #{statistics_recorder_step.2} parent=23 // pred_fallthru
        _
      %v183 = vld [vmem:[%s163] sm:$0xff]
      %v184 = vld [vmem:[%s163 + $0x8] sm:$0xff]
      %v185 = vld [vmem:[%s163 + $0x10] sm:$0xff]
      %v186 = vld [vmem:[%s163 + $0x18] sm:$0xff]
      %v187 = vld [vmem:[%s163 + $0x20] sm:$0xff]
      %v188 = vld [vmem:[%s163 + $0x28] sm:$0xff]
      %v189 = vld [vmem:[%s163 + $0x30] sm:$0xff]
      %v190 = vld [vmem:[%s163 + $0x38] sm:$0xff]
      %s191 = smul.u32 %s16, 2
      %s192 = sadd.s32 %s191, %s17
      %s193 = smul.u32 %s192, 64
      %v194 = vlaneseq
      %v195 = vshrl.u32 %v194, 7
      %v196 = vadd.s32 %v195, 8
      %v197 = vadd.s32 %v195, 16
      %v198 = vadd.s32 %v195, 24
      %v199 = vadd.s32 %v195, 32
      %v200 = vadd.s32 %v195, 40
      %v201 = vadd.s32 %v195, 48
      %v202 = vadd.s32 %v195, 56
      %v203 = vstv %s193
      %v204 = vadd.s32 %v195, %v203
      %v205 = vadd.s32 %v196, %v203
      %v206 = vadd.s32 %v197, %v203
      %v207 = vadd.s32 %v198, %v203
      %v208 = vadd.s32 %v199, %v203
      %v209 = vadd.s32 %v200, %v203
      %v210 = vadd.s32 %v201, %v203
      %v211 = vadd.s32 %v202, %v203
      %vm212 = vcmp.lt.s32.totalorder %v204, 200
      %vm213 = vcmp.lt.s32.totalorder %v205, 200
      %vm214 = vcmp.lt.s32.totalorder %v206, 200
      %vm215 = vcmp.lt.s32.totalorder %v207, 200
      %vm216 = vcmp.lt.s32.totalorder %v208, 200
      %vm217 = vcmp.lt.s32.totalorder %v209, 200
      %vm218 = vcmp.lt.s32.totalorder %v210, 200
      %vm219 = vcmp.lt.s32.totalorder %v211, 200
      %v220 = vsel %vm212, 1, 0
      %v221 = vsel %vm213, 1, 0
      %v222 = vsel %vm214, 1, 0
      %v223 = vsel %vm215, 1, 0
      %v224 = vsel %vm216, 1, 0
      %v225 = vsel %vm217, 1, 0
      %v226 = vsel %vm218, 1, 0
      %v227 = vsel %vm219, 1, 0
      %v228 = vcvt.s32.f32 %v220
      %v229 = vcvt.s32.f32 %v221
      %v230 = vcvt.s32.f32 %v222
      %v231 = vcvt.s32.f32 %v223
      %v232 = vcvt.s32.f32 %v224
      %v233 = vcvt.s32.f32 %v225
      %v234 = vcvt.s32.f32 %v226
      %v235 = vcvt.s32.f32 %v227
      %v236 = vsel %vm212, %v183, 0.0
      %v237 = vsel %vm213, %v184, 0.0
      %v238 = vsel %vm214, %v185, 0.0
      %v239 = vsel %vm215, %v186, 0.0
      %v240 = vsel %vm216, %v187, 0.0
      %v241 = vsel %vm217, %v188, 0.0
      %v242 = vsel %vm218, %v189, 0.0
      %v243 = vsel %vm219, %v190, 0.0
      %vm244 = vcmask 662528
      %v245 = vsel %vm244, %v236, -inf
      %246 = vmax.xlane.f32.xlu0 %v245
      %v247 = vpop.xlane.xlu0 %246
      %v248 = vsel %vm244, %v237, -inf
      %249 = vmax.xlane.f32.xlu0 %v248
      %v250 = vpop.xlane.xlu0 %249
      %v251 = vsel %vm244, %v238, -inf
      %252 = vmax.xlane.f32.xlu0 %v251
      %v253 = vpop.xlane.xlu0 %252
      %v254 = vsel %vm244, %v239, -inf
      %255 = vmax.xlane.f32.xlu0 %v254
      %v256 = vpop.xlane.xlu0 %255
      %v257 = vsel %vm244, %v240, -inf
      %258 = vmax.xlane.f32.xlu0 %v257
      %v259 = vpop.xlane.xlu0 %258
      %v260 = vsel %vm244, %v241, -inf
      %261 = vmax.xlane.f32.xlu0 %v260
      %v262 = vpop.xlane.xlu0 %261
      %v263 = vsel %vm244, %v242, -inf
      %264 = vmax.xlane.f32.xlu0 %v263
      %v265 = vpop.xlane.xlu0 %264
      %v266 = vsel %vm244, %v243, -inf
      %267 = vmax.xlane.f32.xlu0 %v266
      %v268 = vpop.xlane.xlu0 %267
      %v269 = vsub.f32 %v236, %v247
      %v270 = vsub.f32 %v237, %v250
      %v271 = vsub.f32 %v238, %v253
      %v272 = vsub.f32 %v239, %v256
      %v273 = vsub.f32 %v240, %v259
      %v274 = vsub.f32 %v241, %v262
      %v275 = vsub.f32 %v242, %v265
      %v276 = vsub.f32 %v243, %v268
      %v277 = vmul.f32 %v269, 1.442695
      %v278 = vpow.pop %v277
      %v279 = vmul.f32 %v270, 1.442695
      %v280 = vpow.pop %v279
      %v281 = vmul.f32 %v271, 1.442695
      %v282 = vpow.pop %v281
      %v283 = vmul.f32 %v272, 1.442695
      %v284 = vpow.pop %v283
      %v285 = vmul.f32 %v273, 1.442695
      %v286 = vpow.pop %v285
      %v287 = vmul.f32 %v274, 1.442695
      %v288 = vpow.pop %v287
      %v289 = vmul.f32 %v275, 1.442695
      %v290 = vpow.pop %v289
      %v291 = vmul.f32 %v276, 1.442695
      %v292 = vpow.pop %v291
      %v293 = vsel %vm244, %v278, 0.0
      %294 = vadd.xlane.f32.xlu0 %v293
      %v295 = vpop.xlane.xlu0 %294
      %v296 = vsel %vm244, %v280, 0.0
      %297 = vadd.xlane.f32.xlu0 %v296
      %v298 = vpop.xlane.xlu0 %297
      %v299 = vsel %vm244, %v282, 0.0
      %300 = vadd.xlane.f32.xlu0 %v299
      %v301 = vpop.xlane.xlu0 %300
      %v302 = vsel %vm244, %v284, 0.0
      %303 = vadd.xlane.f32.xlu0 %v302
      %v304 = vpop.xlane.xlu0 %303
      %v305 = vsel %vm244, %v286, 0.0
      %306 = vadd.xlane.f32.xlu0 %v305
      %v307 = vpop.xlane.xlu0 %306
      %v308 = vsel %vm244, %v288, 0.0
      %309 = vadd.xlane.f32.xlu0 %v308
      %v310 = vpop.xlane.xlu0 %309
      %v311 = vsel %vm244, %v290, 0.0
      %312 = vadd.xlane.f32.xlu0 %v311
      %v313 = vpop.xlane.xlu0 %312
      %v314 = vsel %vm244, %v292, 0.0
      %315 = vadd.xlane.f32.xlu0 %v314
      %v316 = vpop.xlane.xlu0 %315
      %v317 = vrcp.pop %v295
      %v318 = vrcp.pop %v298
      %v319 = vrcp.pop %v301
      %v320 = vrcp.pop %v304
      %v321 = vrcp.pop %v307
      %v322 = vrcp.pop %v310
      %v323 = vrcp.pop %v313
      %v324 = vrcp.pop %v316
      %v325 = vmul.f32 %v278, %v317
      %v326 = vmul.f32 %v280, %v318
      %v327 = vmul.f32 %v282, %v319
      %v328 = vmul.f32 %v284, %v320
      %v329 = vmul.f32 %v286, %v321
      %v330 = vmul.f32 %v288, %v322
      %v331 = vmul.f32 %v290, %v323
      %v332 = vmul.f32 %v292, %v324
      %v333 = vlog2.pop %v295
      %v334 = vmul.f32 %v333, 0.6931472
      %v335 = vlog2.pop %v298
      %v336 = vmul.f32 %v335, 0.6931472
      %v337 = vlog2.pop %v301
      %v338 = vmul.f32 %v337, 0.6931472
      %v339 = vlog2.pop %v304
      %v340 = vmul.f32 %v339, 0.6931472
      %v341 = vlog2.pop %v307
      %v342 = vmul.f32 %v341, 0.6931472
      %v343 = vlog2.pop %v310
      %v344 = vmul.f32 %v343, 0.6931472
      %v345 = vlog2.pop %v313
      %v346 = vmul.f32 %v345, 0.6931472
      %v347 = vlog2.pop %v316
      %v348 = vmul.f32 %v347, 0.6931472
      %v349 = vsub.f32 %v269, %v334
      %v350 = vsub.f32 %v270, %v336
      %v351 = vsub.f32 %v271, %v338
      %v352 = vsub.f32 %v272, %v340
      %v353 = vsub.f32 %v273, %v342
      %v354 = vsub.f32 %v274, %v344
      %v355 = vsub.f32 %v275, %v346
      %v356 = vsub.f32 %v276, %v348
      %v357 = vld [vmem:[#allocation2] sm:$0x1]
      %v358 = vsel %vm244, %v236, 0.0
      %v359 = vsel %vm244, %v237, 0.0
      %v360 = vadd.f32 %v358, %v359
      %v361 = vsel %vm244, %v238, 0.0
      %v362 = vadd.f32 %v360, %v361
      %v363 = vsel %vm244, %v239, 0.0
      %v364 = vadd.f32 %v362, %v363
      %v365 = vsel %vm244, %v240, 0.0
      %v366 = vadd.f32 %v364, %v365
      %v367 = vsel %vm244, %v241, 0.0
      %v368 = vadd.f32 %v366, %v367
      %v369 = vsel %vm244, %v242, 0.0
      %v370 = vadd.f32 %v368, %v369
      %v371 = vsel %vm244, %v243, 0.0
      %v372 = vadd.f32 %v370, %v371
      %v373 = vrot.slane %v372, 4
      %v374 = vadd.f32 %v372, %v373
      %v375 = vrot.slane %v374, 2
      %v376 = vadd.f32 %v374, %v375
      %v377 = vrot.slane %v376, 1
      %v378 = vadd.f32 %v376, %v377
      %v379 = vadd.f32 %v357, %v378
      %vm380 = vcmask 655360
      %381 = vst.msk [vmem:[#allocation2] sm:$0x1] %vm380, %v379
      %v382 = vld [vmem:[#allocation2 + $0x1] sm:$0x1]
      %v383 = vmul.f32 %v236, %v236
      %v384 = vmul.f32 %v237, %v237
      %v385 = vmul.f32 %v238, %v238
      %v386 = vmul.f32 %v239, %v239
      %v387 = vmul.f32 %v240, %v240
      %v388 = vmul.f32 %v241, %v241
      %v389 = vmul.f32 %v242, %v242
      %v390 = vmul.f32 %v243, %v243
      %v391 = vsel %vm244, %v383, 0.0
      %v392 = vsel %vm244, %v384, 0.0
      %v393 = vadd.f32 %v391, %v392
      %v394 = vsel %vm244, %v385, 0.0
      %v395 = vadd.f32 %v393, %v394
      %v396 = vsel %vm244, %v386, 0.0
      %v397 = vadd.f32 %v395, %v396
      %v398 = vsel %vm244, %v387, 0.0
      %v399 = vadd.f32 %v397, %v398
      %v400 = vsel %vm244, %v388, 0.0
      %v401 = vadd.f32 %v399, %v400
      %v402 = vsel %vm244, %v389, 0.0
      %v403 = vadd.f32 %v401, %v402
      %v404 = vsel %vm244, %v390, 0.0
      %v405 = vadd.f32 %v403, %v404
      %v406 = vrot.slane %v405, 4
      %v407 = vadd.f32 %v405, %v406
      %v408 = vrot.slane %v407, 2
      %v409 = vadd.f32 %v407, %v408
      %v410 = vrot.slane %v409, 1
      %v411 = vadd.f32 %v409, %v410
      %v412 = vadd.f32 %v382, %v411
      %413 = vst.msk [vmem:[#allocation2 + $0x1] sm:$0x1] %vm380, %v412
      %v414 = vmul.f32 %v325, %v228
      %v415 = vmul.f32 %v326, %v229
      %v416 = vmul.f32 %v327, %v230
      %v417 = vmul.f32 %v328, %v231
      %v418 = vmul.f32 %v329, %v232
      %v419 = vmul.f32 %v330, %v233
      %v420 = vmul.f32 %v331, %v234
      %v421 = vmul.f32 %v332, %v235
      %v422 = vld [vmem:[#allocation2 + $0x2] sm:$0x1]
      %v423 = vsel %vm244, %v414, 0.0
      %v424 = vsel %vm244, %v415, 0.0
      %v425 = vadd.f32 %v423, %v424
      %v426 = vsel %vm244, %v416, 0.0
      %v427 = vadd.f32 %v425, %v426
      %v428 = vsel %vm244, %v417, 0.0
      %v429 = vadd.f32 %v427, %v428
      %v430 = vsel %vm244, %v418, 0.0
      %v431 = vadd.f32 %v429, %v430
      %v432 = vsel %vm244, %v419, 0.0
      %v433 = vadd.f32 %v431, %v432
      %v434 = vsel %vm244, %v420, 0.0
      %v435 = vadd.f32 %v433, %v434
      %v436 = vsel %vm244, %v421, 0.0
      %v437 = vadd.f32 %v435, %v436
      %v438 = vrot.slane %v437, 4
      %v439 = vadd.f32 %v437, %v438
      %v440 = vrot.slane %v439, 2
      %v441 = vadd.f32 %v439, %v440
      %v442 = vrot.slane %v441, 1
      %v443 = vadd.f32 %v441, %v442
      %v444 = vadd.f32 %v422, %v443
      %445 = vst.msk [vmem:[#allocation2 + $0x2] sm:$0x1] %vm380, %v444
      %v446 = vld [vmem:[#allocation2 + $0x3] sm:$0x1]
      %v447 = vmul.f32 %v414, %v325
      %v448 = vmul.f32 %v415, %v326
      %v449 = vmul.f32 %v416, %v327
      %v450 = vmul.f32 %v417, %v328
      %v451 = vmul.f32 %v418, %v329
      %v452 = vmul.f32 %v419, %v330
      %v453 = vmul.f32 %v420, %v331
      %v454 = vmul.f32 %v421, %v332
      %v455 = vsel %vm244, %v447, 0.0
      %v456 = vsel %vm244, %v448, 0.0
      %v457 = vadd.f32 %v455, %v456
      %v458 = vsel %vm244, %v449, 0.0
      %v459 = vadd.f32 %v457, %v458
      %v460 = vsel %vm244, %v450, 0.0
      %v461 = vadd.f32 %v459, %v460
      %v462 = vsel %vm244, %v451, 0.0
      %v463 = vadd.f32 %v461, %v462
      %v464 = vsel %vm244, %v452, 0.0
      %v465 = vadd.f32 %v463, %v464
      %v466 = vsel %vm244, %v453, 0.0
      %v467 = vadd.f32 %v465, %v466
      %v468 = vsel %vm244, %v454, 0.0
      %v469 = vadd.f32 %v467, %v468
      %v470 = vrot.slane %v469, 4
      %v471 = vadd.f32 %v469, %v470
      %v472 = vrot.slane %v471, 2
      %v473 = vadd.f32 %v471, %v472
      %v474 = vrot.slane %v473, 1
      %v475 = vadd.f32 %v473, %v474
      %v476 = vadd.f32 %v446, %v475
      %477 = vst.msk [vmem:[#allocation2 + $0x3] sm:$0x1] %vm380, %v476
      %v478 = vmul.f32 %v349, %v228
      %v479 = vmul.f32 %v350, %v229
      %v480 = vmul.f32 %v351, %v230
      %v481 = vmul.f32 %v352, %v231
      %v482 = vmul.f32 %v353, %v232
      %v483 = vmul.f32 %v354, %v233
      %v484 = vmul.f32 %v355, %v234
      %v485 = vmul.f32 %v356, %v235
      %v486 = vld [vmem:[#allocation2 + $0x4] sm:$0x1]
      %v487 = vsel %vm244, %v478, 0.0
      %v488 = vsel %vm244, %v479, 0.0
      %v489 = vadd.f32 %v487, %v488
      %v490 = vsel %vm244, %v480, 0.0
      %v491 = vadd.f32 %v489, %v490
      %v492 = vsel %vm244, %v481, 0.0
      %v493 = vadd.f32 %v491, %v492
      %v494 = vsel %vm244, %v482, 0.0
      %v495 = vadd.f32 %v493, %v494
      %v496 = vsel %vm244, %v483, 0.0
      %v497 = vadd.f32 %v495, %v496
      %v498 = vsel %vm244, %v484, 0.0
      %v499 = vadd.f32 %v497, %v498
      %v500 = vsel %vm244, %v485, 0.0
      %v501 = vadd.f32 %v499, %v500
      %v502 = vrot.slane %v501, 4
      %v503 = vadd.f32 %v501, %v502
      %v504 = vrot.slane %v503, 2
      %v505 = vadd.f32 %v503, %v504
      %v506 = vrot.slane %v505, 1
      %v507 = vadd.f32 %v505, %v506
      %v508 = vadd.f32 %v486, %v507
      %509 = vst.msk [vmem:[#allocation2 + $0x4] sm:$0x1] %vm380, %v508
      %v510 = vld [vmem:[#allocation2 + $0x5] sm:$0x1]
      %v511 = vmul.f32 %v478, %v349
      %v512 = vmul.f32 %v479, %v350
      %v513 = vmul.f32 %v480, %v351
      %v514 = vmul.f32 %v481, %v352
      %v515 = vmul.f32 %v482, %v353
      %v516 = vmul.f32 %v483, %v354
      %v517 = vmul.f32 %v484, %v355
      %v518 = vmul.f32 %v485, %v356
      %v519 = vsel %vm244, %v511, 0.0
      %v520 = vsel %vm244, %v512, 0.0
      %v521 = vadd.f32 %v519, %v520
      %v522 = vsel %vm244, %v513, 0.0
      %v523 = vadd.f32 %v521, %v522
      %v524 = vsel %vm244, %v514, 0.0
      %v525 = vadd.f32 %v523, %v524
      %v526 = vsel %vm244, %v515, 0.0
      %v527 = vadd.f32 %v525, %v526
      %v528 = vsel %vm244, %v516, 0.0
      %v529 = vadd.f32 %v527, %v528
      %v530 = vsel %vm244, %v517, 0.0
      %v531 = vadd.f32 %v529, %v530
      %v532 = vsel %vm244, %v518, 0.0
      %v533 = vadd.f32 %v531, %v532
      %v534 = vrot.slane %v533, 4
      %v535 = vadd.f32 %v533, %v534
      %v536 = vrot.slane %v535, 2
      %v537 = vadd.f32 %v535, %v536
      %v538 = vrot.slane %v537, 1
      %v539 = vadd.f32 %v537, %v538
      %v540 = vadd.f32 %v510, %v539
      %541 = vst.msk [vmem:[#allocation2 + $0x5] sm:$0x1] %vm380, %v540
      %p542 = scmp.eq.s32.totalorder %s17, 1
      // Predicated region
      $region29: #{statistics_recorder_step.2} parent=23 // pred_check
        %p543 = pneg %p542
      $region30: #{statistics_recorder_step.2} parent=23 // pred_check_branch
        %545 = sbr.rel (%p543) target = $region32
      $region31: #{statistics_recorder_step.2} parent=23 // pred_region
        %v546 = vld [vmem:[#allocation2] sm:$0xff]
        %547 = vst.msk [vmem:[%s176] sm:$0xff] %vm244, %v546
      $region32: #{statistics_recorder_step.2} parent=23 // pred_fallthru
        _
      %p548 = scmp.lt.s32.totalorder %s16, 1
      %s549 = scalar_select %p548, %s16, 1
      %s550 = smul.addr %s549, 8
      %s551 = scalar_lea.vmem %s1, %s550
      // Predicated region
      $region33: #{statistics_recorder_step.2} parent=23 // pred_check
        %p552 = pneg %p76
      $region34: #{statistics_recorder_step.2} parent=23 // pred_check_branch
        %554 = sbr.rel (%p552) target = $region36
      $region35: #{statistics_recorder_step.2} parent=23 // pred_region
        _
      $region36: #{statistics_recorder_step.2} parent=23 // pred_fallthru
        _
    $region24: #{statistics_recorder_step.2} parent=5 // pred_fallthru
      _
    %p555 = scmp.le.s32.totalorder 2, %s7
    // Predicated region
    $region37: #{statistics_recorder_step.2} parent=5 // pred_check
      %p556 = pneg %p555
    $region38: #{statistics_recorder_step.2} parent=5 // pred_check_branch
      %558 = sbr.rel (%p556) target = $region40
    $region39: #{statistics_recorder_step.2} parent=5 // pred_region
      %s559 = ssub.s32 %s7, 2
      // Predicated region
      $region41: #{statistics_recorder_step.2} parent=39 // pred_check
        %p560 = pneg %p82
      $region42: #{statistics_recorder_step.2} parent=39 // pred_check_branch
        %562 = sbr.rel (%p560) target = $region44
      $region43: #{statistics_recorder_step.2} parent=39 // pred_region
        %p563 = scmp.lt.s32.totalorder %s18, 1
        %s564 = scalar_select %p563, %s18, 1
        %s565 = smul.addr %s564, 8
        %s566 = scalar_lea.vmem %s1, %s565
      $region44: #{statistics_recorder_step.2} parent=39 // pred_fallthru
        _
    $region40: #{statistics_recorder_step.2} parent=5 // pred_fallthru
      _
  $region6: #{statistics_recorder_step.2} parent=0 // loop_footer
    %s11 = sadd.s32 1, %s7
  $region7: #{statistics_recorder_step.2} parent=0 // loop_footer_branch
    %6 = sbr.rel target = $region3
  $region8: #{statistics_recorder_step.2} parent=0 // loop_exit
    _

// kernel: statistics_recorder_step.3
$region0: #{statistics_recorder_step.3}
  #allocation0 [shape = 'u32[]', space=smem, size = 0x4, offset = 0x4, fixed_abs, tag = 'smem constant byte address 0x4 - core index']
  #allocation1 [shape = 'u32[72,128]{1,0:T(1,128)}', space=vmem, size = 0x9000, scoped, tag = 'internal scratch']
  %s0 = inlined_call_operand.vmem [shape: f32[4], index: 0, kind: input, shape index: {}]
  %s1 = inlined_call_operand.vmem [shape: f32[2,8,81], index: 1, kind: input, shape index: {}]
  %s2 = inlined_call_operand.vmem [shape: f32[3,3,81], index: 2, kind: input, shape index: {}]
  %s3 = inlined_call_operand.hbm [shape: f32[3,7,81], index: 3, kind: output, shape index: {}]
  %s4 = sld [smem:[#allocation0]]
  $region26: #{statistics_recorder_step.3} parent=0
    _
  %s6 = ssub.s32 1, %s4
  %s7 = scalar_select 0, %s6, %s4
  $region1: #{statistics_recorder_step.3} parent=0
    #allocation2 [shape = 'u8[512]{0}', space=smem, size = 0x200, scoped, tag = 'input window, operand 0, single buffered']
    #allocation3 [shape = 's32[1]{0}', space=sflag, size = 0x4, scoped, tag = 'scoped memory for statistics_recorder_step.3']
    #allocation4 [shape = 's32[1]{0}', space=sflag, size = 0x4, scoped, tag = 'scoped memory for statistics_recorder_step.3']
    #allocation5 [shape = 'u8[12288]{0}', space=vmem, size = 0x3000, scoped, tag = 'output window, operand 0, single buffered']
    %8 = vsyncpa [#allocation4], 0
    %9 = vsyncpa [#allocation3], 0
    // Predicated region
    $region2: #{statistics_recorder_step.3} parent=1 // pred_check
      _
    $region3: #{statistics_recorder_step.3} parent=1 // pred_check_branch
      %11 = sbr.rel (0) target = $region5
    $region4: #{statistics_recorder_step.3} parent=1 // pred_region
      %13 = vsyncadd [#allocation4], 0
      %s15 = sshll.u32 %s0, 4
      %s16 = int_to_ptr.vmem [resolvable:$true] %s15
      %18 = dma.vmem_to_smem %s16, 16, [#allocation2], [#allocation4]
    $region5: #{statistics_recorder_step.3} parent=1 // pred_fallthru
      _
    // Predicated region
    $region6: #{statistics_recorder_step.3} parent=1 // pred_check
      _
    $region7: #{statistics_recorder_step.3} parent=1 // pred_check_branch
      %20 = sbr.rel (0) target = $region9
    $region8: #{statistics_recorder_step.3} parent=1 // pred_region
      _
    $region9: #{statistics_recorder_step.3} parent=1 // pred_fallthru
      _
    // Predicated region
    $region10: #{statistics_recorder_step.3} parent=1 // pred_check
      _
    $region11: #{statistics_recorder_step.3} parent=1 // pred_check_branch
      %22 = sbr.rel (0) target = $region13
    $region12: #{statistics_recorder_step.3} parent=1 // pred_region
      _
    $region13: #{statistics_recorder_step.3} parent=1 // pred_fallthru
      _
    // Predicated region
    $region14: #{statistics_recorder_step.3} parent=1 // pred_check
      _
    $region15: #{statistics_recorder_step.3} parent=1 // pred_check_branch
      %24 = sbr.rel (0) target = $region17
    $region16: #{statistics_recorder_step.3} parent=1 // pred_region
      %26 = dma.done [#allocation4], 16
    $region17: #{statistics_recorder_step.3} parent=1 // pred_fallthru
      _
    %27 = sfence
    %v28 = vld [vmem:[%s1] sm:$0xff]
    %s29 = scalar_lea.vmem %s1, 8
    %v30 = vld [vmem:[%s29] sm:$0xff]
    %v31 = vadd.f32 %v28, %v30
    %s32 = sld [smem:[#allocation2]]
    %s33 = sld [smem:[#allocation2 + $0x1]]
    %s34 = sld [smem:[#allocation2 + $0x2]]
    %s35 = sld [smem:[#allocation2 + $0x3]]
    %v36 = vstv %s32
    %v37 = vmul.f32 %v31, %v36
    %v38 = vmul.f32 %v31, %v37
    %v40 = vrot.slane %v38, 7
    %v42 = vsub.f32 %v31, %v40
    %v43 = vstv %s33
    %v44 = vmul.f32 %v42, %v43
    %v45 = vld [vmem:[%s2] sm:$0x1]
    %v46 = vmul.f32 %v45, 0.9
    %v47 = vmul.f32 %v37, 0.1
    %v48 = vadd.f32 %v46, %v47
    %v49 = vld [vmem:[%s2 + $0x1] sm:$0x1]
    %v50 = vmul.f32 %v49, 0.999
    %v51 = vmul.f32 %v37, 0.001
    %v53 = vrot.slane %v51, 1
    %v55 = vadd.f32 %v50, %v53
    %v56 = vld [vmem:[%s2 + $0x2] sm:$0x1]
    %v57 = vmul.f32 %v56, 0.999
    %v58 = vmul.f32 %v44, 0.001
    %v60 = vrot.slane %v58, 1
    %v62 = vadd.f32 %v57, %v60
    %v63 = vstv %s34
    %v64 = vmul.f32 %v48, %v63
    %v65 = vstv %s35
    %v66 = vmul.f32 %v55, %v65
    %v67 = vmul.f32 %v62, %v65
    %v68 = vmul.f32 %v64, %v64
    %v69 = vsub.f32 %v66, %v68
    %vm70 = vcmask 655360
    %71 = vst.msk [vmem:[#allocation5] sm:$0x1] %vm70, %v48
    %72 = vst.msk [vmem:[#allocation5 + $0x1] sm:$0x1] %vm70, %v55
    %73 = vst.msk [vmem:[#allocation5 + $0x2] sm:$0x1] %vm70, %v62
    %74 = vst.msk [vmem:[#allocation5 + $0x3] sm:$0x1] %vm70, %v64
    %75 = vst.msk [vmem:[#allocation5 + $0x4] sm:$0x1] %vm70, %v66
    %76 = vst.msk [vmem:[#allocation5 + $0x5] sm:$0x1] %vm70, %v67
    %77 = vst.msk [vmem:[#allocation5 + $0x6] sm:$0x1] %vm70, %v69
    %s78 = scalar_lea.vmem %s2, 4
    %v79 = vld [vmem:[%s78] sm:$0x1]
    %v80 = vmul.f32 %v79, 0.9
    %v82 = vrot.slane %v47, 2
    %v84 = vadd.f32 %v80, %v82
    %v85 = vld [vmem:[%s78 + $0x1] sm:$0x1]
    %v86 = vmul.f32 %v85, 0.999
    %v87 = vrot.slane %v51, 3
    %v89 = vadd.f32 %v86, %v87
    %v90 = vld [vmem:[%s78 + $0x2] sm:$0x1]
    %v91 = vmul.f32 %v90, 0.999
    %v92 = vrot.slane %v58, 3
    %v94 = vadd.f32 %v91, %v92
    %v95 = vmul.f32 %v84, %v63
    %v96 = vmul.f32 %v89, %v65
    %v97 = vmul.f32 %v94, %v65
    %v98 = vmul.f32 %v95, %v95
    %v99 = vsub.f32 %v96, %v98
    %s100 = scalar_lea.vmem [#allocation5], 8
    %101 = vst.msk [vmem:[%s100] sm:$0x1] %vm70, %v84
    %102 = vst.msk [vmem:[%s100 + $0x1] sm:$0x1] %vm70, %v89
    %103 = vst.msk [vmem:[%s100 + $0x2] sm:$0x1] %vm70, %v94
    %104 = vst.msk [vmem:[%s100 + $0x3] sm:$0x1] %vm70, %v95
    %105 = vst.msk [vmem:[%s100 + $0x4] sm:$0x1] %vm70, %v96
    %106 = vst.msk [vmem:[%s100 + $0x5] sm:$0x1] %vm70, %v97
    %107 = vst.msk [vmem:[%s100 + $0x6] sm:$0x1] %vm70, %v99
    %s108 = scalar_lea.vmem %s2, 8
    %v109 = vld [vmem:[%s108] sm:$0x1]
    %v110 = vmul.f32 %v109, 0.9
    %v111 = vrot.slane %v47, 4
    %v113 = vadd.f32 %v110, %v111
    %v114 = vld [vmem:[%s108 + $0x1] sm:$0x1]
    %v115 = vmul.f32 %v114, 0.999
    %v116 = vrot.slane %v51, 5
    %v118 = vadd.f32 %v115, %v116
    %v119 = vld [vmem:[%s108 + $0x2] sm:$0x1]
    %v120 = vmul.f32 %v119, 0.999
    %v121 = vrot.slane %v58, 5
    %v123 = vadd.f32 %v120, %v121
    %v124 = vmul.f32 %v113, %v63
    %v125 = vmul.f32 %v118, %v65
    %v126 = vmul.f32 %v123, %v65
    %v127 = vmul.f32 %v124, %v124
    %v128 = vsub.f32 %v125, %v127
    %s129 = scalar_lea.vmem [#allocation5], 16
    %130 = vst.msk [vmem:[%s129] sm:$0x1] %vm70, %v113
    %131 = vst.msk [vmem:[%s129 + $0x1] sm:$0x1] %vm70, %v118
    %132 = vst.msk [vmem:[%s129 + $0x2] sm:$0x1] %vm70, %v123
    %133 = vst.msk [vmem:[%s129 + $0x3] sm:$0x1] %vm70, %v124
    %134 = vst.msk [vmem:[%s129 + $0x4] sm:$0x1] %vm70, %v125
    %135 = vst.msk [vmem:[%s129 + $0x5] sm:$0x1] %vm70, %v126
    %136 = vst.msk [vmem:[%s129 + $0x6] sm:$0x1] %vm70, %v128
    // Predicated region
    $region18: #{statistics_recorder_step.3} parent=1 // pred_check
      _
    $region19: #{statistics_recorder_step.3} parent=1 // pred_check_branch
      %138 = sbr.rel (0) target = $region21
    $region20: #{statistics_recorder_step.3} parent=1 // pred_region
      %140 = vsyncadd [#allocation3], 0
      %s141 = sshll.u32 [#allocation5], 4
      %s142 = int_to_ptr.vmem [resolvable:$true] %s141
      %s143 = sshll.u32 %s3, 4
      %s144 = int_to_ptr.hbm [resolvable:$true] %s143
      %149 = dma.vmem_to_hbm [thread:$0]  %s142, 384, %s144, [#allocation3], 128, 128, 8
    $region21: #{statistics_recorder_step.3} parent=1 // pred_fallthru
      _
    // Predicated region
    $region22: #{statistics_recorder_step.3} parent=1 // pred_check
      _
    $region23: #{statistics_recorder_step.3} parent=1 // pred_check_branch
      %151 = sbr.rel (0) target = $region25
    $region24: #{statistics_recorder_step.3} parent=1 // pred_region
      %153 = dma.done [#allocation3], 384
    $region25: #{statistics_recorder_step.3} parent=1 // pred_fallthru
      _
    %154 = vsyncpa [#allocation3], 1
    %155 = vsyncpa [#allocation4], 1

</llo_original>
